<compile_context>
chip_gen: v5e
topology: v5e:2x2
jax: 0.10.0
libtpu: 0.0.40
codegen_flags: <defaults>
</compile_context>

<pallas_src>
import functools

import jax
import jax.numpy as jnp
from jax.experimental import pallas as pl
from jax.experimental.pallas import tpu as pltpu


# ---------------------------------------------------------------------------
# helpers
# ---------------------------------------------------------------------------
def _round_up(x, m):
    return -(-x // m) * m


def _sublane_multiple(dtype):
    itemsize = jnp.dtype(dtype).itemsize
    return max(8, 32 // itemsize)  # 8 fp32, 16 bf16, 32 int8/fp8


def _vmem_capacity_bytes():
    try:
        return int(pltpu.get_tpu_info().vmem_capacity_bytes)
    except Exception:
        return 64 * 1024 * 1024  # conservative lower bound (v7x per-TC)


# ---------------------------------------------------------------------------
# main (row-tiled) path
# ---------------------------------------------------------------------------
def _rmsnorm_kernel(x_ref, w_ref, o_ref, *, inv_dim):
    # x_ref: (TILE_ROWS, DIM); w_ref: (1, DIM) resident weight.
    x = x_ref[...].astype(jnp.float32)
    ssq = jnp.sum(x * x, axis=-1, keepdims=True)
    inv_rms = jax.lax.rsqrt(ssq * inv_dim)  # no eps: matches reference module
    o_ref[...] = (x * inv_rms * w_ref[...].astype(jnp.float32)).astype(o_ref.dtype)


def _pick_tile_rows(rows, dim, dtype, budget_bytes):
    """Row tile that fits the VMEM budget while giving >= ~8 pipelined steps.

    Returns 0 if even `sublane_mult` rows do not fit (-> wide/lane-tiled path).
    """
    itemsize = jnp.dtype(dtype).itemsize
    sm = _sublane_multiple(dtype)
    # Per-row VMEM: double-buffered input + double-buffered output, plus the
    # in-kernel f32 working set (x.astype(f32), x*x) for sub-f32 inputs.
    bytes_per_row = 2 * dim * itemsize + 2 * dim * itemsize
    if itemsize < 4:
        bytes_per_row += 2 * dim * 4
    t_budget = (budget_bytes // bytes_per_row) // sm * sm
    if t_budget < sm:
        return 0

    t = min(t_budget, 1024)  # 512-1024 rows already hit ~85%+ of HBM roofline
    # Prefer >= ~8 grid steps, but keep tiles >= ~256 rows / ~1 MiB.
    eight_step = _round_up(pl.cdiv(rows, 8), sm)
    floor_rows = max(256, (1 << 20) // max(1, dim * itemsize))
    floor_rows = _round_up(floor_rows, sm)
    t = min(t, max(eight_step, floor_rows))
    t = min(t, _round_up(rows, sm))
    t = max(t, sm)

    # Nudge to an even number of grid steps so v7x's 2 TensorCores balance.
    steps = pl.cdiv(rows, t)
    if steps > 1 and steps % 2 == 1:
        t = max(sm, _round_up(pl.cdiv(rows, steps + 1), sm))
    return t


def _rmsnorm_rows(x2d, w2d, tile_rows, vmem_cap):
    rows, dim = x2d.shape
    itemsize = jnp.dtype(x2d.dtype).itemsize
    grid = (pl.cdiv(rows, tile_rows),)  # ragged last row block is masked

    f32_extra = 2 * tile_rows * dim * 4 if itemsize < 4 else 0
    footprint = 2 * tile_rows * dim * itemsize * 2 + f32_extra + 2 * dim * 4
    vmem_limit = int(max(32 << 20, min(int(vmem_cap * 0.85), footprint + (16 << 20))))

    return pl.pallas_call(
        functools.partial(_rmsnorm_kernel, inv_dim=1.0 / dim),
        out_shape=jax.ShapeDtypeStruct((rows, dim), x2d.dtype),
        grid_spec=pltpu.PrefetchScalarGridSpec(
            num_scalar_prefetch=0,
            grid=grid,
            in_specs=[
                # Last block dim == full array dim -> no (8,128) constraint,
                # Mosaic masks ragged lanes; no external pad/slice pass.
                pl.BlockSpec((tile_rows, dim), lambda i: (i, 0)),
                pl.BlockSpec((1, dim), lambda i: (0, 0)),  # weight stays resident
            ],
            out_specs=pl.BlockSpec((tile_rows, dim), lambda i: (i, 0)),
        ),
        compiler_params=pltpu.CompilerParams(
            dimension_semantics=("parallel",),
            vmem_limit_bytes=vmem_limit,
        ),
    )(x2d, w2d)


# ---------------------------------------------------------------------------
# wide path: hidden so large that even a few rows exceed the VMEM budget.
# Two streaming passes: (1) per-row sum of squares over lane chunks,
# (2) scale each lane chunk.
# ---------------------------------------------------------------------------
def _ssq_kernel(x_ref, ssq_ref, *, dim, tile_dim):
    k = pl.program_id(1)

    @pl.when(k == 0)
    def _():
        ssq_ref[...] = jnp.zeros_like(ssq_ref)

    x = x_ref[...].astype(jnp.float32)
    if dim % tile_dim:
        # Ragged last lane chunk: mask out-of-bounds lanes explicitly so they
        # cannot pollute the per-row reduction.
        lane = jax.lax.broadcasted_iota(jnp.int32, x.shape, dimension=1)
        x = jnp.where(k * tile_dim + lane < dim, x, 0.0)
    ssq_ref[...] += jnp.sum(x * x, axis=-1, keepdims=True)


def _scale_kernel(x_ref, ssq_ref, w_ref, o_ref, *, inv_dim):
    x = x_ref[...].astype(jnp.float32)
    inv_rms = jax.lax.rsqrt(ssq_ref[...] * inv_dim)
    o_ref[...] = (x * inv_rms * w_ref[...].astype(jnp.float32)).astype(o_ref.dtype)


def _rmsnorm_wide(x2d, w2d, budget, vmem_cap):
    rows, dim = x2d.shape
    dtype = x2d.dtype
    itemsize = jnp.dtype(dtype).itemsize
    sm = _sublane_multiple(dtype)

    tile_rows = _round_up(min(rows, 256), sm)
    # Per lane-column bytes for one tile_rows slab: dbl-buffered in + out + f32 temps.
    bytes_per_lane = tile_rows * (2 * itemsize + 2 * itemsize + (2 * 4 if itemsize < 4 else 4))
    tile_dim = max(128, (budget // bytes_per_lane) // 128 * 128)
    tile_dim = min(tile_dim, _round_up(dim, 128))

    footprint = tile_rows * tile_dim * bytes_per_lane // tile_rows + 2 * tile_dim * 4
    vmem_limit = int(max(32 << 20, min(int(vmem_cap * 0.85), footprint + (16 << 20))))

    grid = (pl.cdiv(rows, tile_rows), pl.cdiv(dim, tile_dim))

    ssq = pl.pallas_call(
        functools.partial(_ssq_kernel, dim=dim, tile_dim=tile_dim),
        out_shape=jax.ShapeDtypeStruct((rows, 1), jnp.float32),
        grid_spec=pltpu.PrefetchScalarGridSpec(
            num_scalar_prefetch=0,
            grid=grid,
            in_specs=[pl.BlockSpec((tile_rows, tile_dim), lambda i, k: (i, k))],
            out_specs=pl.BlockSpec((tile_rows, 1), lambda i, k: (i, 0)),
        ),
        compiler_params=pltpu.CompilerParams(
            dimension_semantics=("parallel", "arbitrary"),
            vmem_limit_bytes=vmem_limit,
        ),
    )(x2d)

    return pl.pallas_call(
        functools.partial(_scale_kernel, inv_dim=1.0 / dim),
        out_shape=jax.ShapeDtypeStruct((rows, dim), dtype),
        grid_spec=pltpu.PrefetchScalarGridSpec(
            num_scalar_prefetch=0,
            grid=grid,
            in_specs=[
                pl.BlockSpec((tile_rows, tile_dim), lambda i, k: (i, k)),
                pl.BlockSpec((tile_rows, 1), lambda i, k: (i, 0)),
                pl.BlockSpec((1, tile_dim), lambda i, k: (0, k)),
            ],
            out_specs=pl.BlockSpec((tile_rows, tile_dim), lambda i, k: (i, k)),
        ),
        compiler_params=pltpu.CompilerParams(
            dimension_semantics=("parallel", "parallel"),
            vmem_limit_bytes=vmem_limit,
        ),
    )(x2d, ssq, w2d)


# ---------------------------------------------------------------------------
# public entry point
# ---------------------------------------------------------------------------
def rmsnorm(x, weight):
    """x: (..., dim), weight: (dim,) -> same shape/dtype as x."""
    orig_shape = x.shape
    dim = orig_shape[-1]
    rows = 1
    for s in orig_shape[:-1]:
        rows *= s
    x2d = x.reshape(rows, dim)
    w2d = weight.reshape(1, dim)

    vmem_cap = _vmem_capacity_bytes()
    budget = int(vmem_cap * 0.55)  # leave headroom for Mosaic internal scratch

    tile_rows = _pick_tile_rows(rows, dim, x.dtype, budget)
    if tile_rows == 0:
        out2d = _rmsnorm_wide(x2d, w2d, budget, vmem_cap)
    else:
        out2d = _rmsnorm_rows(x2d, w2d, tile_rows, vmem_cap)
    return out2d.reshape(orig_shape)


if __name__ == "__main__":
    key = jax.random.PRNGKey(0)
    batch, seq, hidden = 2, 8, 32
    x = jax.random.normal(key, (batch, seq, hidden), dtype=jnp.float32)

    # Deterministic parameter init: matches nn.Parameter(torch.ones(dim)).
    weight = jnp.ones((hidden,), dtype=jnp.float32)

    y = rmsnorm(x, weight)
    jax.block_until_ready(y)

    # Reference check (plain JAX, mirrors the PyTorch forward exactly).
    var = jnp.mean(x * x, axis=-1, keepdims=True)
    y_ref = x / jnp.sqrt(var) * weight
    assert y.shape == x.shape and y.dtype == x.dtype
    assert jnp.allclose(y, y_ref, atol=1e-5, rtol=1e-5)

    print("KERNEL_OK")
</pallas_src>

<mosaic_0001>
module attributes {stable_mosaic.version = 11 : i64} {
  func.func @_rmsnorm_kernel(%arg0: i32, %arg1: memref<16x32xf32, #tpu.memory_space<vmem>>, %arg2: memref<1x32xf32, #tpu.memory_space<vmem>>, %arg3: memref<16x32xf32, #tpu.memory_space<vmem>>) attributes {dimension_semantics = [#tpu.dimension_semantics<parallel>], iteration_bounds = array<i64: 1>, scalar_prefetch = 0 : i64, scratch_operands = 0 : i64, tpu.core_type = #tpu.core_type<tc>, window_params = [{transform_indices = @transform_0, window_bounds = array<i64: 16, 32>}, {pipeline_mode = #tpu.pipeline_mode<synchronous>, transform_indices = @transform_1, window_bounds = array<i64: 1, 32>}, {transform_indices = @transform_2, window_bounds = array<i64: 16, 32>}]} {
    %c0 = arith.constant 0 : index
    %c0_0 = arith.constant 0 : index
    %0 = vector.load %arg1[%c0, %c0_0] : memref<16x32xf32, #tpu.memory_space<vmem>>, vector<16x32xf32>
    %1 = arith.mulf %0, %0 : vector<16x32xf32>
    %cst = arith.constant dense<0.000000e+00> : vector<16xf32>
    %2 = vector.multi_reduction <add>, %1, %cst [1] : vector<16x32xf32> to vector<16xf32>
    %3 = vector.shape_cast %2 : vector<16xf32> to vector<16x1xf32>
    %cst_1 = arith.constant 3.125000e-02 : f32
    %4 = vector.broadcast %cst_1 : f32 to vector<16x1xf32>
    %5 = arith.mulf %3, %4 : vector<16x1xf32>
    %6 = math.rsqrt %5 : vector<16x1xf32>
    %7 = vector.broadcast %6 : vector<16x1xf32> to vector<16x32xf32>
    %8 = arith.mulf %0, %7 : vector<16x32xf32>
    %c0_2 = arith.constant 0 : index
    %c0_3 = arith.constant 0 : index
    %9 = vector.load %arg2[%c0_2, %c0_3] : memref<1x32xf32, #tpu.memory_space<vmem>>, vector<1x32xf32>
    %10 = vector.broadcast %9 : vector<1x32xf32> to vector<16x32xf32>
    %11 = arith.mulf %8, %10 : vector<16x32xf32>
    %c0_4 = arith.constant 0 : index
    %c0_5 = arith.constant 0 : index
    %12 = vector.load %arg3[%c0_4, %c0_5] : memref<16x32xf32, #tpu.memory_space<vmem>>, vector<16x32xf32>
    tpu.vector_store %arg3[%c0_4, %c0_5], %11 {strides = array<i32>} : memref<16x32xf32, #tpu.memory_space<vmem>>, vector<16x32xf32>,
    return
  }
  func.func @transform_0(%arg0: i32) -> (i32, i32) {
    %c0_i32 = arith.constant 0 : i32
    %c0_i32_0 = arith.constant 0 : i32
    return %arg0, %c0_i32 : i32, i32
  }
  func.func @transform_1(%arg0: i32) -> (i32, i32) {
    %c0_i32 = arith.constant 0 : i32
    %c0_i32_0 = arith.constant 0 : i32
    %c0_i32_1 = arith.constant 0 : i32
    return %c0_i32, %c0_i32_0 : i32, i32
  }
  func.func @transform_2(%arg0: i32) -> (i32, i32) {
    %c0_i32 = arith.constant 0 : i32
    %c0_i32_0 = arith.constant 0 : i32
    return %arg0, %c0_i32 : i32, i32
  }
}

</mosaic_0001>

<llo_original>
// kernel: tpu_custom_call.1
$region0: #{tpu_custom_call.1}
  #allocation0 [shape = 'u32[]', space=smem, size = 0x4, offset = 0x4, fixed_abs, tag = 'smem constant byte address 0x4 - core index']
  #allocation1 [shape = 'u32[72,128]{1,0:T(1,128)}', space=vmem, size = 0x9000, scoped, tag = 'internal scratch']
  %s0 = inlined_call_operand.hbm [shape: f32[16,32], index: 0, kind: input, shape index: {}]
  %s1 = inlined_call_operand.hbm [shape: f32[1,32], index: 1, kind: input, shape index: {}]
  %s2 = inlined_call_operand.hbm [shape: f32[16,32], index: 2, kind: output, shape index: {}]
  %s3 = sld [smem:[#allocation0]]
  $region26: #{tpu_custom_call.1} parent=0
    _
  %s5 = ssub.s32 1, %s3
  %s6 = scalar_select 0, %s5, %s3
  $region1: #{tpu_custom_call.1} parent=0
    #allocation2 [shape = 'u8[8192]{0}', space=vmem, size = 0x2000, scoped, tag = 'input window, operand 0, single buffered']
    #allocation3 [shape = 's32[1]{0}', space=sflag, size = 0x4, scoped, tag = 'scoped memory for tpu_custom_call.1']
    #allocation4 [shape = 's32[1]{0}', space=sflag, size = 0x4, scoped, tag = 'scoped memory for tpu_custom_call.1']
    #allocation5 [shape = 'u8[512]{0}', space=vmem, size = 0x400, scoped, tag = 'input window, operand 1, single buffered']
    #allocation6 [shape = 's32[1]{0}', space=sflag, size = 0x4, scoped, tag = 'scoped memory for tpu_custom_call.1']
    #allocation7 [shape = 'u8[8192]{0}', space=vmem, size = 0x2000, scoped, tag = 'output window, operand 0, single buffered']
    %7 = vsyncpa [#allocation3], 0
    %8 = vsyncpa [#allocation6], 0
    %9 = vsyncpa [#allocation4], 0
    // Predicated region
    $region2: #{tpu_custom_call.1} parent=1 // pred_check
      _
    $region3: #{tpu_custom_call.1} parent=1 // pred_check_branch
      %11 = sbr.rel (0) target = $region5
    $region4: #{tpu_custom_call.1} parent=1 // pred_region
      %13 = vsyncadd [#allocation3], 0
      %s14 = sshll.u32 %s0, 4
      %s15 = int_to_ptr.hbm [resolvable:$true] %s14
      %s16 = sshll.u32 [#allocation2], 4
      %s17 = int_to_ptr.vmem [resolvable:$true] %s16
      %22 = dma.hbm_to_vmem [thread:$0]  %s15, 256, %s17, [#allocation3], 128, 128, 8
    $region5: #{tpu_custom_call.1} parent=1 // pred_fallthru
      _
    // Predicated region
    $region6: #{tpu_custom_call.1} parent=1 // pred_check
      _
    $region7: #{tpu_custom_call.1} parent=1 // pred_check_branch
      %24 = sbr.rel (0) target = $region9
    $region8: #{tpu_custom_call.1} parent=1 // pred_region
      %26 = vsyncadd [#allocation6], 0
      %s28 = sshll.u32 %s1, 4
      %s29 = int_to_ptr.hbm [resolvable:$true] %s28
      %s30 = sshll.u32 [#allocation5], 4
      %s31 = int_to_ptr.vmem [resolvable:$true] %s30
      %33 = dma.hbm_to_vmem [thread:$0]  %s29, 16, %s31, [#allocation6]
    $region9: #{tpu_custom_call.1} parent=1 // pred_fallthru
      _
    // Predicated region
    $region10: #{tpu_custom_call.1} parent=1 // pred_check
      _
    $region11: #{tpu_custom_call.1} parent=1 // pred_check_branch
      %35 = sbr.rel (0) target = $region13
    $region12: #{tpu_custom_call.1} parent=1 // pred_region
      %37 = dma.done [#allocation3], 256
    $region13: #{tpu_custom_call.1} parent=1 // pred_fallthru
      _
    // Predicated region
    $region14: #{tpu_custom_call.1} parent=1 // pred_check
      _
    $region15: #{tpu_custom_call.1} parent=1 // pred_check_branch
      %39 = sbr.rel (0) target = $region17
    $region16: #{tpu_custom_call.1} parent=1 // pred_region
      %41 = dma.done [#allocation6], 16
    $region17: #{tpu_custom_call.1} parent=1 // pred_fallthru
      _
    %v42 = vld [vmem:[#allocation2] sm:$0xff]
    %v43 = vld [vmem:[#allocation2 + $0x8] sm:$0xff]
    %v44 = vmul.f32 %v42, %v42
    %v45 = vmul.f32 %v43, %v43
    %vm46 = vcmask 261120
    %v47 = vsel %vm46, %v44, 0.0
    %48 = vadd.xlane.f32.xlu0 %v47
    %v49 = vpop.xlane.xlu0 %48
    %v50 = vsel %vm46, %v45, 0.0
    %51 = vadd.xlane.f32.xlu0 %v50
    %v52 = vpop.xlane.xlu0 %51
    %v53 = vmul.f32 %v49, 0.03125
    %v54 = vmul.f32 %v52, 0.03125
    %v55 = vrsqrt.pop %v53
    %v56 = vmul.f32 %v55, %v53
    %v57 = vmul.f32 %v56, %v55
    %v58 = vmul.f32 0.5, %v57
    %v59 = vsub.f32 1.5, %v58
    %v60 = vmul.f32 %v55, %v59
    %vm61 = vweird.f32 %v53
    %vm62 = vweird.f32 %v55
    %vm63 = vmor %vm61, %vm62
    %v64 = vsel %vm63, %v55, %v60
    %v65 = vrsqrt.pop %v54
    %v66 = vmul.f32 %v65, %v54
    %v67 = vmul.f32 %v66, %v65
    %v68 = vmul.f32 0.5, %v67
    %v69 = vsub.f32 1.5, %v68
    %v70 = vmul.f32 %v65, %v69
    %vm71 = vweird.f32 %v54
    %vm72 = vweird.f32 %v65
    %vm73 = vmor %vm71, %vm72
    %v74 = vsel %vm73, %v65, %v70
    %v75 = vmul.f32 %v42, %v64
    %v76 = vmul.f32 %v43, %v74
    %v77 = vld [vmem:[#allocation5] sm:$0x1]
    %v79 = vperm.slane %v77, 0
    %v81 = vmul.f32 %v75, %v79
    %v82 = vmul.f32 %v76, %v79
    %83 = vst.msk [vmem:[#allocation7] sm:$0xff] %vm46, %v81
    %84 = vst.msk [vmem:[#allocation7 + $0x8] sm:$0xff] %vm46, %v82
    // Predicated region
    $region18: #{tpu_custom_call.1} parent=1 // pred_check
      _
    $region19: #{tpu_custom_call.1} parent=1 // pred_check_branch
      %86 = sbr.rel (0) target = $region21
    $region20: #{tpu_custom_call.1} parent=1 // pred_region
      %88 = vsyncadd [#allocation4], 0
      %s89 = sshll.u32 [#allocation7], 4
      %s90 = int_to_ptr.vmem [resolvable:$true] %s89
      %s91 = sshll.u32 %s2, 4
      %s92 = int_to_ptr.hbm [resolvable:$true] %s91
      %97 = dma.vmem_to_hbm [thread:$0]  %s90, 256, %s92, [#allocation4], 128, 128, 8
    $region21: #{tpu_custom_call.1} parent=1 // pred_fallthru
      _
    // Predicated region
    $region22: #{tpu_custom_call.1} parent=1 // pred_check
      _
    $region23: #{tpu_custom_call.1} parent=1 // pred_check_branch
      %99 = sbr.rel (0) target = $region25
    $region24: #{tpu_custom_call.1} parent=1 // pred_region
      %101 = dma.done [#allocation4], 256
    $region25: #{tpu_custom_call.1} parent=1 // pred_fallthru
      _
    %102 = vsyncpa [#allocation3], 1
    %103 = vsyncpa [#allocation6], 1
    %104 = vsyncpa [#allocation4], 1

</llo_original>
